<compile_context>
chip_gen: v7x
topology: tpu7x:2x2x1
jax: 0.10.0
libtpu: 0.0.40
codegen_flags: <defaults>
</compile_context>

<pallas_src>
import jax
import jax.numpy as jnp
from jax.experimental import pallas as pl
from jax.experimental.pallas import tpu as pltpu

EPS = 1e-5
LANES = 128  # lane width: activations / output stay lane-dense (unmasked stores)
KPAD = 32    # contraction (sublane) padding: real fan-ins are 8/20/10 -> pad to 32


def mlp_kernel(x_ref, w_ref, v_ref, o_ref):
    # x_ref: (B, 32)       real input in cols 0:8, zero elsewhere
    # w_ref: (3, 32, 128)  zero-padded [w1 | w2 | w3], contraction dim first
    # v_ref: (8, 128)      rows 0..4: g1, be1, g2, be2, b3 (zero-padded)
    # o_ref: (B, 128)      real output in cols 0:4, zero elsewhere
    x = x_ref[...]
    v = v_ref[...]                       # one (8,128) load; static row views below
    g1, be1 = v[0:1, :], v[1:2, :]
    g2, be2 = v[2:3, :], v[3:4, :]
    b3 = v[4:5, :]

    def bn_relu(h, gamma, beta):
        # training-mode BatchNorm1d (biased batch variance), affine folded so the
        # (B,128) tensor only sees one multiply-add; stats work stays on (1,128).
        mean = jnp.mean(h, axis=0, keepdims=True)
        var = jnp.mean((h - mean) * (h - mean), axis=0, keepdims=True)
        scale = gamma * jax.lax.rsqrt(var + EPS)   # EUP rsqrt on (1,128) only
        shift = beta - mean * scale
        # Padded lanes: gamma = beta = 0 -> scale = shift = 0 -> stay exactly 0.
        return jnp.maximum(h * scale + shift, 0.0)

    # Linear biases b1/b2 are dropped: a constant pre-BN bias cancels exactly
    # under the batch-mean subtraction of training-mode BatchNorm1d.
    # Dots stay f32 for exact parity with the reference (see header note on the
    # deliberately skipped single-pass-bf16 MXU option).

    # layer 1: Linear(8,20) + BN + ReLU
    h = jnp.dot(x, w_ref[0], preferred_element_type=jnp.float32)        # (B,128)
    h = bn_relu(h, g1, be1)

    # layer 2: Linear(20,10) + BN + ReLU — contract over the first 32 lanes only
    # (lanes 20:128 of h are exactly zero, so this is lossless).
    h = jnp.dot(h[:, :KPAD], w_ref[1], preferred_element_type=jnp.float32)
    h = bn_relu(h, g2, be2)

    # layer 3: Linear(10,4) + bias — lane-dense unmasked (B,128) store.
    o_ref[...] = (
        jnp.dot(h[:, :KPAD], w_ref[2], preferred_element_type=jnp.float32) + b3
    )


def pack_params(params):
    """Pack the tiny per-layer tensors into two tile-aligned slabs (done once)."""
    (w1, b1, g1, be1, w2, b2, g2, be2, w3, b3) = params
    del b1, b2  # constant pre-BN biases cancel under batch-mean subtraction

    w_slab = jnp.zeros((3, KPAD, LANES), jnp.float32)   # 48 KiB (was 196 KiB)
    w_slab = w_slab.at[0, :8, :20].set(w1)
    w_slab = w_slab.at[1, :20, :10].set(w2)
    w_slab = w_slab.at[2, :10, :4].set(w3)

    v_slab = jnp.zeros((8, LANES), jnp.float32)
    v_slab = v_slab.at[0, :20].set(jnp.reshape(g1, (-1,)))
    v_slab = v_slab.at[1, :20].set(jnp.reshape(be1, (-1,)))
    v_slab = v_slab.at[2, :10].set(jnp.reshape(g2, (-1,)))
    v_slab = v_slab.at[3, :10].set(jnp.reshape(be2, (-1,)))
    v_slab = v_slab.at[4, :4].set(jnp.reshape(b3, (-1,)))
    return w_slab, v_slab


@jax.jit
def mlp_forward(x, w_slab, v_slab):
    B = x.shape[0]
    # Wrapper-side padding shrunk to the 32-lane contraction width.
    x_pad = jnp.zeros((B, KPAD), jnp.float32).at[:, :8].set(x)

    # Roughly-honest estimate of the padded work actually executed.
    cost = pl.CostEstimate(
        flops=2 * 3 * B * KPAD * LANES,            # three (B,32)x(32,128) matmuls
        transcendentals=2 * LANES,                 # two rsqrt over (1,128)
        bytes_accessed=4 * (B * KPAD + 3 * KPAD * LANES + 8 * LANES + B * LANES),
    )

    out = pl.pallas_call(
        mlp_kernel,
        out_shape=jax.ShapeDtypeStruct((B, LANES), jnp.float32),
        in_specs=[pl.BlockSpec(memory_space=pltpu.MemorySpace.VMEM)] * 3,
        out_specs=pl.BlockSpec(memory_space=pltpu.MemorySpace.VMEM),
        compiler_params=pltpu.CompilerParams(
            # Explicit scoped-VMEM budget: whole-batch-resident design needs
            # ~B*(KPAD+LANES)*4 B + 52 KiB of params; 16 MiB leaves huge
            # headroom on every generation (incl. v7x's 64 MiB physical VMEM).
            vmem_limit_bytes=16 * 1024 * 1024,
        ),
        cost_estimate=cost,
    )(x_pad, w_slab, v_slab)
    return out[:, :4]


def init_params(key):
    """Deterministic synthetic parameters matching the module's shapes.
    Linear weights are (in, out) (transposed vs. PyTorch's (out, in))."""
    ks = jax.random.split(key, 8)

    def lin(k, fan_in, fan_out):
        bound = 1.0 / jnp.sqrt(fan_in)
        kw, kb = jax.random.split(k)
        w = jax.random.uniform(kw, (fan_in, fan_out), jnp.float32, -bound, bound)
        b = jax.random.uniform(kb, (1, fan_out), jnp.float32, -bound, bound)
        return w, b

    w1, b1 = lin(ks[0], 8, 20)
    w2, b2 = lin(ks[1], 20, 10)
    w3, b3 = lin(ks[2], 10, 4)

    # BatchNorm affine params (PyTorch default is gamma=1, beta=0; perturb so
    # the affine path is actually exercised).
    g1 = 1.0 + 0.1 * jax.random.normal(ks[3], (1, 20), jnp.float32)
    be1 = 0.1 * jax.random.normal(ks[4], (1, 20), jnp.float32)
    g2 = 1.0 + 0.1 * jax.random.normal(ks[5], (1, 10), jnp.float32)
    be2 = 0.1 * jax.random.normal(ks[6], (1, 10), jnp.float32)

    return (w1, b1, g1, be1, w2, b2, g2, be2, w3, b3)


def mlp_reference(x, params):
    """Pure-JAX reference (includes b1/b2 — they cancel under BN)."""
    (w1, b1, g1, be1, w2, b2, g2, be2, w3, b3) = params

    def bn_relu(h, g, be):
        m = jnp.mean(h, axis=0, keepdims=True)
        v = jnp.mean((h - m) ** 2, axis=0, keepdims=True)
        return jnp.maximum((h - m) / jnp.sqrt(v + EPS) * g + be, 0.0)

    h = bn_relu(x @ w1 + b1, g1, be1)
    h = bn_relu(h @ w2 + b2, g2, be2)
    return h @ w3 + b3


if __name__ == "__main__":
    key = jax.random.PRNGKey(0)
    kx, kp = jax.random.split(key)

    B = 8  # batch size (training-mode BatchNorm needs B > 1; 8 = one sublane tile)
    x = jax.random.normal(kx, (B, 8), jnp.float32)
    params = init_params(kp)

    # Pack once; reuse for every forward call.
    w_slab, v_slab = pack_params(params)

    out = mlp_forward(x, w_slab, v_slab)
    out = jax.block_until_ready(out)

    ref = mlp_reference(x, params)
    assert out.shape == (B, 4), out.shape
    assert jnp.allclose(out, ref, atol=1e-4, rtol=1e-4), (
        "mismatch vs reference: max abs err = %e"
        % float(jnp.max(jnp.abs(out - ref)))
    )

    print("KERNEL_OK")
</pallas_src>

<mosaic_0001>
module attributes {stable_mosaic.version = 11 : i64} {
  func.func @mlp_kernel(%arg0: memref<8x32xf32, #tpu.memory_space<vmem>>, %arg1: memref<3x32x128xf32, #tpu.memory_space<vmem>>, %arg2: memref<8x128xf32, #tpu.memory_space<vmem>>, %arg3: memref<8x128xf32, #tpu.memory_space<vmem>>) attributes {dimension_semantics = [], scalar_prefetch = 0 : i64, scratch_operands = 0 : i64, tpu.core_type = #tpu.core_type<tc>} {
    %c0 = arith.constant 0 : index
    %c0_0 = arith.constant 0 : index
    %0 = vector.load %arg0[%c0, %c0_0] : memref<8x32xf32, #tpu.memory_space<vmem>>, vector<8x32xf32>
    %c0_1 = arith.constant 0 : index
    %c0_2 = arith.constant 0 : index
    %1 = vector.load %arg2[%c0_1, %c0_2] : memref<8x128xf32, #tpu.memory_space<vmem>>, vector<8x128xf32>
    %2 = vector.extract_strided_slice %1 {offsets = [0, 0], sizes = [1, 128], strides = [1, 1]} : vector<8x128xf32> to vector<1x128xf32>
    %3 = vector.extract_strided_slice %1 {offsets = [1, 0], sizes = [1, 128], strides = [1, 1]} : vector<8x128xf32> to vector<1x128xf32>
    %4 = vector.extract_strided_slice %1 {offsets = [2, 0], sizes = [1, 128], strides = [1, 1]} : vector<8x128xf32> to vector<1x128xf32>
    %5 = vector.extract_strided_slice %1 {offsets = [3, 0], sizes = [1, 128], strides = [1, 1]} : vector<8x128xf32> to vector<1x128xf32>
    %6 = vector.extract_strided_slice %1 {offsets = [4, 0], sizes = [1, 128], strides = [1, 1]} : vector<8x128xf32> to vector<1x128xf32>
    %c0_3 = arith.constant 0 : index
    %c0_4 = arith.constant 0 : index
    %c0_5 = arith.constant 0 : index
    %7 = vector.load %arg1[%c0_3, %c0_4, %c0_5] : memref<3x32x128xf32, #tpu.memory_space<vmem>>, vector<1x32x128xf32>
    %8 = vector.shape_cast %7 : vector<1x32x128xf32> to vector<32x128xf32>
    %cst = arith.constant dense<0.000000e+00> : vector<8x128xf32>
    %9 = tpu.matmul %0, %8, %cst {dimension_numbers = #tpu.dot_dimension_numbers<[1], [0], [0], [1], [0, 0, 1, 1], [], []>} : vector<8x32xf32>, vector<32x128xf32>, vector<8x128xf32> -> vector<8x128xf32>
    %cst_6 = arith.constant dense<0.000000e+00> : vector<128xf32>
    %10 = vector.multi_reduction <add>, %9, %cst_6 [0] : vector<8x128xf32> to vector<128xf32>
    %11 = vector.shape_cast %10 : vector<128xf32> to vector<1x128xf32>
    %cst_7 = arith.constant 8.000000e+00 : f32
    %12 = vector.broadcast %cst_7 : f32 to vector<1x128xf32>
    %13 = arith.divf %11, %12 : vector<1x128xf32>
    %14 = vector.broadcast %13 : vector<1x128xf32> to vector<8x128xf32>
    %15 = arith.subf %9, %14 : vector<8x128xf32>
    %16 = vector.broadcast %13 : vector<1x128xf32> to vector<8x128xf32>
    %17 = arith.subf %9, %16 : vector<8x128xf32>
    %18 = arith.mulf %15, %17 : vector<8x128xf32>
    %cst_8 = arith.constant dense<0.000000e+00> : vector<128xf32>
    %19 = vector.multi_reduction <add>, %18, %cst_8 [0] : vector<8x128xf32> to vector<128xf32>
    %20 = vector.shape_cast %19 : vector<128xf32> to vector<1x128xf32>
    %cst_9 = arith.constant 8.000000e+00 : f32
    %21 = vector.broadcast %cst_9 : f32 to vector<1x128xf32>
    %22 = arith.divf %20, %21 : vector<1x128xf32>
    %cst_10 = arith.constant 9.99999974E-6 : f32
    %23 = vector.broadcast %cst_10 : f32 to vector<1x128xf32>
    %24 = arith.addf %22, %23 : vector<1x128xf32>
    %25 = math.rsqrt %24 : vector<1x128xf32>
    %26 = arith.mulf %2, %25 : vector<1x128xf32>
    %27 = arith.mulf %13, %26 : vector<1x128xf32>
    %28 = arith.subf %3, %27 : vector<1x128xf32>
    %29 = vector.broadcast %26 : vector<1x128xf32> to vector<8x128xf32>
    %30 = arith.mulf %9, %29 : vector<8x128xf32>
    %31 = vector.broadcast %28 : vector<1x128xf32> to vector<8x128xf32>
    %32 = arith.addf %30, %31 : vector<8x128xf32>
    %cst_11 = arith.constant 0.000000e+00 : f32
    %33 = vector.broadcast %cst_11 : f32 to vector<8x128xf32>
    %34 = arith.maximumf %32, %33 : vector<8x128xf32>
    %35 = vector.extract_strided_slice %34 {offsets = [0, 0], sizes = [8, 32], strides = [1, 1]} : vector<8x128xf32> to vector<8x32xf32>
    %c1 = arith.constant 1 : index
    %c0_12 = arith.constant 0 : index
    %c0_13 = arith.constant 0 : index
    %36 = vector.load %arg1[%c1, %c0_12, %c0_13] : memref<3x32x128xf32, #tpu.memory_space<vmem>>, vector<1x32x128xf32>
    %37 = vector.shape_cast %36 : vector<1x32x128xf32> to vector<32x128xf32>
    %cst_14 = arith.constant dense<0.000000e+00> : vector<8x128xf32>
    %38 = tpu.matmul %35, %37, %cst_14 {dimension_numbers = #tpu.dot_dimension_numbers<[1], [0], [0], [1], [0, 0, 1, 1], [], []>} : vector<8x32xf32>, vector<32x128xf32>, vector<8x128xf32> -> vector<8x128xf32>
    %cst_15 = arith.constant dense<0.000000e+00> : vector<128xf32>
    %39 = vector.multi_reduction <add>, %38, %cst_15 [0] : vector<8x128xf32> to vector<128xf32>
    %40 = vector.shape_cast %39 : vector<128xf32> to vector<1x128xf32>
    %cst_16 = arith.constant 8.000000e+00 : f32
    %41 = vector.broadcast %cst_16 : f32 to vector<1x128xf32>
    %42 = arith.divf %40, %41 : vector<1x128xf32>
    %43 = vector.broadcast %42 : vector<1x128xf32> to vector<8x128xf32>
    %44 = arith.subf %38, %43 : vector<8x128xf32>
    %45 = vector.broadcast %42 : vector<1x128xf32> to vector<8x128xf32>
    %46 = arith.subf %38, %45 : vector<8x128xf32>
    %47 = arith.mulf %44, %46 : vector<8x128xf32>
    %cst_17 = arith.constant dense<0.000000e+00> : vector<128xf32>
    %48 = vector.multi_reduction <add>, %47, %cst_17 [0] : vector<8x128xf32> to vector<128xf32>
    %49 = vector.shape_cast %48 : vector<128xf32> to vector<1x128xf32>
    %cst_18 = arith.constant 8.000000e+00 : f32
    %50 = vector.broadcast %cst_18 : f32 to vector<1x128xf32>
    %51 = arith.divf %49, %50 : vector<1x128xf32>
    %cst_19 = arith.constant 9.99999974E-6 : f32
    %52 = vector.broadcast %cst_19 : f32 to vector<1x128xf32>
    %53 = arith.addf %51, %52 : vector<1x128xf32>
    %54 = math.rsqrt %53 : vector<1x128xf32>
    %55 = arith.mulf %4, %54 : vector<1x128xf32>
    %56 = arith.mulf %42, %55 : vector<1x128xf32>
    %57 = arith.subf %5, %56 : vector<1x128xf32>
    %58 = vector.broadcast %55 : vector<1x128xf32> to vector<8x128xf32>
    %59 = arith.mulf %38, %58 : vector<8x128xf32>
    %60 = vector.broadcast %57 : vector<1x128xf32> to vector<8x128xf32>
    %61 = arith.addf %59, %60 : vector<8x128xf32>
    %cst_20 = arith.constant 0.000000e+00 : f32
    %62 = vector.broadcast %cst_20 : f32 to vector<8x128xf32>
    %63 = arith.maximumf %61, %62 : vector<8x128xf32>
    %64 = vector.extract_strided_slice %63 {offsets = [0, 0], sizes = [8, 32], strides = [1, 1]} : vector<8x128xf32> to vector<8x32xf32>
    %c2 = arith.constant 2 : index
    %c0_21 = arith.constant 0 : index
    %c0_22 = arith.constant 0 : index
    %65 = vector.load %arg1[%c2, %c0_21, %c0_22] : memref<3x32x128xf32, #tpu.memory_space<vmem>>, vector<1x32x128xf32>
    %66 = vector.shape_cast %65 : vector<1x32x128xf32> to vector<32x128xf32>
    %cst_23 = arith.constant dense<0.000000e+00> : vector<8x128xf32>
    %67 = tpu.matmul %64, %66, %cst_23 {dimension_numbers = #tpu.dot_dimension_numbers<[1], [0], [0], [1], [0, 0, 1, 1], [], []>} : vector<8x32xf32>, vector<32x128xf32>, vector<8x128xf32> -> vector<8x128xf32>
    %68 = vector.broadcast %6 : vector<1x128xf32> to vector<8x128xf32>
    %69 = arith.addf %67, %68 : vector<8x128xf32>
    %c0_24 = arith.constant 0 : index
    %c0_25 = arith.constant 0 : index
    %70 = vector.load %arg3[%c0_24, %c0_25] : memref<8x128xf32, #tpu.memory_space<vmem>>, vector<8x128xf32>
    tpu.vector_store %arg3[%c0_24, %c0_25], %69 {strides = array<i32>} : memref<8x128xf32, #tpu.memory_space<vmem>>, vector<8x128xf32>,
    return
  }
}

</mosaic_0001>

<llo_original>
// kernel: mlp_forward.1
$region0: #{mlp_forward.1}
  #allocation0 [shape = 'u32[]', space=smem, size = 0x4, offset = 0x4, fixed_abs, tag = 'smem constant byte address 0x4 - core index']
  #allocation1 [shape = 'u32[144,128]{1,0:T(1,128)}', space=vmem, size = 0x12000, scoped, tag = 'internal scratch']
  %s0 = inlined_call_operand.vmem [shape: f32[8,32], index: 0, kind: input, shape index: {}]
  %s1 = inlined_call_operand.hbm [shape: f32[3,32,128], index: 1, kind: input, shape index: {}]
  %s2 = inlined_call_operand.vmem [shape: f32[8,128], index: 2, kind: input, shape index: {}]
  %s3 = inlined_call_operand.vmem [shape: f32[8,128], index: 3, kind: output, shape index: {}]
  %s4 = sld [smem:[#allocation0]]
  $region26: #{mlp_forward.1} parent=0
    _
  %s6 = ssub.s32 1, %s4
  %s7 = scalar_select 0, %s6, %s4
  $region1: #{mlp_forward.1} parent=0
    #allocation2 [shape = 'u8[49152]{0}', space=vmem, size = 0xc000, scoped, tag = 'input window, operand 1, single buffered']
    #allocation3 [shape = 's32[1]{0}', space=sflag, size = 0x4, scoped, tag = 'scoped memory for mlp_forward.1']
    %8 = vsyncpa [#allocation3], 0
    // Predicated region
    $region2: #{mlp_forward.1} parent=1 // pred_check
      _
    $region3: #{mlp_forward.1} parent=1 // pred_check_branch
      %10 = sbr.rel (0) target = $region5
    $region4: #{mlp_forward.1} parent=1 // pred_region
      _
    $region5: #{mlp_forward.1} parent=1 // pred_fallthru
      _
    // Predicated region
    $region6: #{mlp_forward.1} parent=1 // pred_check
      _
    $region7: #{mlp_forward.1} parent=1 // pred_check_branch
      %12 = sbr.rel (0) target = $region9
    $region8: #{mlp_forward.1} parent=1 // pred_region
      %s14 = ssub.s32 1536, 1536
      %15 = vsyncadd [#allocation3], %s14
      %s16 = sshll.u32 [#allocation2], 4
      %s17 = int_to_ptr.vmem [resolvable:$true] %s16
      %22 = dma.hbm_to_vmem [thread:$0]  %s1, 1536, %s17, [#allocation3], 128, 128, 8
    $region9: #{mlp_forward.1} parent=1 // pred_fallthru
      _
    // Predicated region
    $region10: #{mlp_forward.1} parent=1 // pred_check
      _
    $region11: #{mlp_forward.1} parent=1 // pred_check_branch
      %24 = sbr.rel (0) target = $region13
    $region12: #{mlp_forward.1} parent=1 // pred_region
      _
    $region13: #{mlp_forward.1} parent=1 // pred_fallthru
      _
    // Predicated region
    $region14: #{mlp_forward.1} parent=1 // pred_check
      _
    $region15: #{mlp_forward.1} parent=1 // pred_check_branch
      %26 = sbr.rel (0) target = $region17
    $region16: #{mlp_forward.1} parent=1 // pred_region
      %27 = dma.done [#allocation3], 1536
    $region17: #{mlp_forward.1} parent=1 // pred_fallthru
      _
    %v28 = vld [vmem:[%s0] sm:$0xff]
    %v29 = vld [vmem:[%s2] sm:$0xff]
    %v30 = vld [vmem:[#allocation2] sm:$0xff]
    %v31 = vld [vmem:[#allocation2 + $0x8] sm:$0xff]
    %v32 = vld [vmem:[#allocation2 + $0x10] sm:$0xff]
    %v33 = vld [vmem:[#allocation2 + $0x18] sm:$0xff]
    %vm34 = vcmask 261120
    %v36 = vsel %vm34, %v28, 0
    %38 = vmatprep.subr.mxu0 0.0
    %39 = vmatpush1.msra.mxu0 %v30
    %40 = vmatprep.subr.mxu0 0.0
    %41 = vmatpush1.msra.mxu0 %v31
    %42 = vmatprep.subr.mxu0 0.0
    %43 = vmatpush1.msra.mxu0 %v32
    %44 = vmatprep.subr.mxu0 0.0
    %45 = vmatpush1.msra.mxu0 %v33
    %46 = vmatprep.subr.mxu0 0.0
    %47 = vmatpush1.msra.mxu0 0.0
    %48 = vmatprep.subr.mxu0 0.0
    %49 = vmatpush1.msra.mxu0 0.0
    %50 = vmatprep.subr.mxu0 0.0
    %51 = vmatpush1.msra.mxu0 0.0
    %52 = vmatprep.subr.mxu0 0.0
    %53 = vmatpush1.msra.mxu0 0.0
    %54 = vmatprep.subr.mxu0 0.0
    %55 = vmatpush1.msra.mxu0 0.0
    %56 = vmatprep.subr.mxu0 0.0
    %57 = vmatpush1.msra.mxu0 0.0
    %58 = vmatprep.subr.mxu0 0.0
    %59 = vmatpush1.msra.mxu0 0.0
    %60 = vmatprep.subr.mxu0 0.0
    %61 = vmatpush1.msra.mxu0 0.0
    %62 = vmatprep.subr.mxu0 0.0
    %63 = vmatpush1.msra.mxu0 0.0
    %64 = vmatprep.subr.mxu0 0.0
    %65 = vmatpush1.msra.mxu0 0.0
    %66 = vmatprep.subr.mxu0 0.0
    %67 = vmatpush1.msra.mxu0 0.0
    %68 = vmatprep.subr.mxu0 0.0
    %69 = vmatpush1.msra.mxu0 0.0
    %70 = vmatprep.subr.mxu0 0.0
    %71 = vmatpush1.msra.mxu0 0.0
    %72 = vmatprep.subr.mxu0 0.0
    %73 = vmatpush1.msra.mxu0 0.0
    %74 = vmatprep.subr.mxu0 0.0
    %75 = vmatpush1.msra.mxu0 0.0
    %76 = vmatprep.subr.mxu0 0.0
    %77 = vmatpush1.msra.mxu0 0.0
    %78 = vmatprep.subr.mxu0 0.0
    %79 = vmatpush1.msra.mxu0 0.0
    %80 = vmatprep.subr.mxu0 0.0
    %81 = vmatpush1.msra.mxu0 0.0
    %82 = vmatprep.subr.mxu0 0.0
    %83 = vmatpush1.msra.mxu0 0.0
    %84 = vmatprep.subr.mxu0 0.0
    %85 = vmatpush1.msra.mxu0 0.0
    %86 = vmatprep.subr.mxu0 0.0
    %87 = vmatpush1.msra.mxu0 0.0
    %88 = vmatprep.subr.mxu0 0.0
    %89 = vmatpush1.msra.mxu0 0.0
    %90 = vmatprep.subr.mxu0 0.0
    %91 = vmatpush1.msra.mxu0 0.0
    %92 = vmatprep.subr.mxu0 0.0
    %93 = vmatpush1.msra.mxu0 0.0
    %94 = vmatprep.subr.mxu0 0.0
    %95 = vmatpush1.msra.mxu0 0.0
    %96 = vmatprep.subr.mxu0 0.0
    %97 = vmatpush1.msra.mxu0 0.0
    %98 = vmatprep.subr.mxu0 0.0
    %99 = vmatpush1.msra.mxu0 0.0
    %100 = vmatprep.subr.mxu0 0.0
    %101 = vmatpush1.msra.mxu0 0.0
    %102 = vmatprep.mubr.f32.mxu0 0.0
    %103 = vmatmul.mubr.f32.gmra.mrb[0].mxu0 %v36
    %v104 = vpop.f32.mrb[0].mxu0
    %v105 = vadd.f32 0.0, %v104
    %v106 = vpop.f32.mrb[0].mxu0
    %107 = vdwg.mxu0
    %v108 = vrot.slane %v105, 4
    %v109 = vadd.f32 %v105, %v108
    %v110 = vrot.slane %v109, 2
    %v111 = vadd.f32 %v109, %v110
    %v112 = vrot.slane %v111, 1
    %v113 = vadd.f32 %v111, %v112
    %v114 = vrcp.pop 8.0
    %v115 = vmul.f32 %v113, %v114
    %v116 = vsub.f32 %v105, %v115
    %v117 = vmul.f32 %v116, %v116
    %v118 = vrot.slane %v117, 4
    %v119 = vadd.f32 %v117, %v118
    %v120 = vrot.slane %v119, 2
    %v121 = vadd.f32 %v119, %v120
    %v122 = vrot.slane %v121, 1
    %v123 = vadd.f32 %v121, %v122
    %v124 = vmul.f32 %v123, %v114
    %v125 = vadd.f32 %v124, 1e-05
    %v126 = vrsqrt.pop %v125
    %v127 = vmul.f32 %v29, %v126
    %v128 = vmul.f32 %v115, %v127
    %v130 = vrot.slane %v128, 7
    %v132 = vsub.f32 %v29, %v130
    %v133 = vlaneseq
    %v134 = vshrl.u32 %v133, 7
    %v135 = vsub.s32 0, %v134
    %v136 = vrot.slane %v127, %v135
    %v137 = vmul.f32 %v105, %v136
    %v138 = vlaneseq
    %v139 = vshrl.u32 %v138, 7
    %v140 = vsub.s32 1, %v139
    %v141 = vrot.slane %v132, %v140
    %v142 = vadd.f32 %v137, %v141
    %v143 = vmax.f32 %v142, 0.0
    %s144 = scalar_lea.vmem [#allocation2], 32
    %v145 = vld [vmem:[%s144] sm:$0xff]
    %v146 = vld [vmem:[%s144 + $0x8] sm:$0xff]
    %v147 = vld [vmem:[%s144 + $0x10] sm:$0xff]
    %v148 = vld [vmem:[%s144 + $0x18] sm:$0xff]
    %v150 = vsel %vm34, %v143, 0
    %152 = vmatprep.subr.mxu0 0.0
    %153 = vmatpush1.msra.mxu0 %v145
    %154 = vmatprep.subr.mxu0 0.0
    %155 = vmatpush1.msra.mxu0 %v146
    %156 = vmatprep.subr.mxu0 0.0
    %157 = vmatpush1.msra.mxu0 %v147
    %158 = vmatprep.subr.mxu0 0.0
    %159 = vmatpush1.msra.mxu0 %v148
    %160 = vmatprep.subr.mxu0 0.0
    %161 = vmatpush1.msra.mxu0 0.0
    %162 = vmatprep.subr.mxu0 0.0
    %163 = vmatpush1.msra.mxu0 0.0
    %164 = vmatprep.subr.mxu0 0.0
    %165 = vmatpush1.msra.mxu0 0.0
    %166 = vmatprep.subr.mxu0 0.0
    %167 = vmatpush1.msra.mxu0 0.0
    %168 = vmatprep.subr.mxu0 0.0
    %169 = vmatpush1.msra.mxu0 0.0
    %170 = vmatprep.subr.mxu0 0.0
    %171 = vmatpush1.msra.mxu0 0.0
    %172 = vmatprep.subr.mxu0 0.0
    %173 = vmatpush1.msra.mxu0 0.0
    %174 = vmatprep.subr.mxu0 0.0
    %175 = vmatpush1.msra.mxu0 0.0
    %176 = vmatprep.subr.mxu0 0.0
    %177 = vmatpush1.msra.mxu0 0.0
    %178 = vmatprep.subr.mxu0 0.0
    %179 = vmatpush1.msra.mxu0 0.0
    %180 = vmatprep.subr.mxu0 0.0
    %181 = vmatpush1.msra.mxu0 0.0
    %182 = vmatprep.subr.mxu0 0.0
    %183 = vmatpush1.msra.mxu0 0.0
    %184 = vmatprep.subr.mxu0 0.0
    %185 = vmatpush1.msra.mxu0 0.0
    %186 = vmatprep.subr.mxu0 0.0
    %187 = vmatpush1.msra.mxu0 0.0
    %188 = vmatprep.subr.mxu0 0.0
    %189 = vmatpush1.msra.mxu0 0.0
    %190 = vmatprep.subr.mxu0 0.0
    %191 = vmatpush1.msra.mxu0 0.0
    %192 = vmatprep.subr.mxu0 0.0
    %193 = vmatpush1.msra.mxu0 0.0
    %194 = vmatprep.subr.mxu0 0.0
    %195 = vmatpush1.msra.mxu0 0.0
    %196 = vmatprep.subr.mxu0 0.0
    %197 = vmatpush1.msra.mxu0 0.0
    %198 = vmatprep.subr.mxu0 0.0
    %199 = vmatpush1.msra.mxu0 0.0
    %200 = vmatprep.subr.mxu0 0.0
    %201 = vmatpush1.msra.mxu0 0.0
    %202 = vmatprep.subr.mxu0 0.0
    %203 = vmatpush1.msra.mxu0 0.0
    %204 = vmatprep.subr.mxu0 0.0
    %205 = vmatpush1.msra.mxu0 0.0
    %206 = vmatprep.subr.mxu0 0.0
    %207 = vmatpush1.msra.mxu0 0.0
    %208 = vmatprep.subr.mxu0 0.0
    %209 = vmatpush1.msra.mxu0 0.0
    %210 = vmatprep.subr.mxu0 0.0
    %211 = vmatpush1.msra.mxu0 0.0
    %212 = vmatprep.subr.mxu0 0.0
    %213 = vmatpush1.msra.mxu0 0.0
    %214 = vmatprep.subr.mxu0 0.0
    %215 = vmatpush1.msra.mxu0 0.0
    %216 = vmatprep.mubr.f32.mxu0 0.0
    %217 = vmatmul.mubr.f32.gmra.mrb[0].mxu0 %v150
    %v218 = vpop.f32.mrb[0].mxu0
    %v219 = vadd.f32 0.0, %v218
    %v220 = vpop.f32.mrb[0].mxu0
    %221 = vdwg.mxu0
    %v222 = vrot.slane %v219, 4
    %v223 = vadd.f32 %v219, %v222
    %v224 = vrot.slane %v223, 2
    %v225 = vadd.f32 %v223, %v224
    %v226 = vrot.slane %v225, 1
    %v227 = vadd.f32 %v225, %v226
    %v228 = vmul.f32 %v227, %v114
    %v229 = vsub.f32 %v219, %v228
    %v230 = vmul.f32 %v229, %v229
    %v231 = vrot.slane %v230, 4
    %v232 = vadd.f32 %v230, %v231
    %v233 = vrot.slane %v232, 2
    %v234 = vadd.f32 %v232, %v233
    %v235 = vrot.slane %v234, 1
    %v236 = vadd.f32 %v234, %v235
    %v237 = vmul.f32 %v236, %v114
    %v238 = vadd.f32 %v237, 1e-05
    %v239 = vrsqrt.pop %v238
    %v240 = vmul.f32 %v29, %v239
    %v241 = vmul.f32 %v228, %v240
    %v243 = vrot.slane %v241, 7
    %v245 = vsub.f32 %v29, %v243
    %v246 = vlaneseq
    %v247 = vshrl.u32 %v246, 7
    %v248 = vsub.s32 2, %v247
    %v249 = vrot.slane %v240, %v248
    %v250 = vmul.f32 %v219, %v249
    %v251 = vlaneseq
    %v252 = vshrl.u32 %v251, 7
    %v253 = vsub.s32 3, %v252
    %v254 = vrot.slane %v245, %v253
    %v255 = vadd.f32 %v250, %v254
    %v256 = vmax.f32 %v255, 0.0
    %s257 = scalar_lea.vmem [#allocation2], 64
    %v258 = vld [vmem:[%s257] sm:$0xff]
    %v259 = vld [vmem:[%s257 + $0x8] sm:$0xff]
    %v260 = vld [vmem:[%s257 + $0x10] sm:$0xff]
    %v261 = vld [vmem:[%s257 + $0x18] sm:$0xff]
    %v262 = vlaneseq
    %v263 = vshrl.u32 %v262, 7
    %v264 = vsub.s32 4, %v263
    %v265 = vrot.slane %v29, %v264
    %v267 = vsel %vm34, %v256, 0
    %269 = vmatprep.subr.mxu0 0.0
    %270 = vmatpush1.msra.mxu0 %v258
    %271 = vmatprep.subr.mxu0 0.0
    %272 = vmatpush1.msra.mxu0 %v259
    %273 = vmatprep.subr.mxu0 0.0
    %274 = vmatpush1.msra.mxu0 %v260
    %275 = vmatprep.subr.mxu0 0.0
    %276 = vmatpush1.msra.mxu0 %v261
    %277 = vmatprep.subr.mxu0 0.0
    %278 = vmatpush1.msra.mxu0 0.0
    %279 = vmatprep.subr.mxu0 0.0
    %280 = vmatpush1.msra.mxu0 0.0
    %281 = vmatprep.subr.mxu0 0.0
    %282 = vmatpush1.msra.mxu0 0.0
    %283 = vmatprep.subr.mxu0 0.0
    %284 = vmatpush1.msra.mxu0 0.0
    %285 = vmatprep.subr.mxu0 0.0
    %286 = vmatpush1.msra.mxu0 0.0
    %287 = vmatprep.subr.mxu0 0.0
    %288 = vmatpush1.msra.mxu0 0.0
    %289 = vmatprep.subr.mxu0 0.0
    %290 = vmatpush1.msra.mxu0 0.0
    %291 = vmatprep.subr.mxu0 0.0
    %292 = vmatpush1.msra.mxu0 0.0
    %293 = vmatprep.subr.mxu0 0.0
    %294 = vmatpush1.msra.mxu0 0.0
    %295 = vmatprep.subr.mxu0 0.0
    %296 = vmatpush1.msra.mxu0 0.0
    %297 = vmatprep.subr.mxu0 0.0
    %298 = vmatpush1.msra.mxu0 0.0
    %299 = vmatprep.subr.mxu0 0.0
    %300 = vmatpush1.msra.mxu0 0.0
    %301 = vmatprep.subr.mxu0 0.0
    %302 = vmatpush1.msra.mxu0 0.0
    %303 = vmatprep.subr.mxu0 0.0
    %304 = vmatpush1.msra.mxu0 0.0
    %305 = vmatprep.subr.mxu0 0.0
    %306 = vmatpush1.msra.mxu0 0.0
    %307 = vmatprep.subr.mxu0 0.0
    %308 = vmatpush1.msra.mxu0 0.0
    %309 = vmatprep.subr.mxu0 0.0
    %310 = vmatpush1.msra.mxu0 0.0
    %311 = vmatprep.subr.mxu0 0.0
    %312 = vmatpush1.msra.mxu0 0.0
    %313 = vmatprep.subr.mxu0 0.0
    %314 = vmatpush1.msra.mxu0 0.0
    %315 = vmatprep.subr.mxu0 0.0
    %316 = vmatpush1.msra.mxu0 0.0
    %317 = vmatprep.subr.mxu0 0.0
    %318 = vmatpush1.msra.mxu0 0.0
    %319 = vmatprep.subr.mxu0 0.0
    %320 = vmatpush1.msra.mxu0 0.0
    %321 = vmatprep.subr.mxu0 0.0
    %322 = vmatpush1.msra.mxu0 0.0
    %323 = vmatprep.subr.mxu0 0.0
    %324 = vmatpush1.msra.mxu0 0.0
    %325 = vmatprep.subr.mxu0 0.0
    %326 = vmatpush1.msra.mxu0 0.0
    %327 = vmatprep.subr.mxu0 0.0
    %328 = vmatpush1.msra.mxu0 0.0
    %329 = vmatprep.subr.mxu0 0.0
    %330 = vmatpush1.msra.mxu0 0.0
    %331 = vmatprep.subr.mxu0 0.0
    %332 = vmatpush1.msra.mxu0 0.0
    %333 = vmatprep.mubr.f32.mxu0 0.0
    %334 = vmatmul.mubr.f32.gmra.mrb[0].mxu0 %v267
    %v335 = vpop.f32.mrb[0].mxu0
    %v336 = vadd.f32 %v265, %v335
    %v337 = vpop.f32.mrb[0].mxu0
    %338 = vdwg.mxu0
    %339 = vst [vmem:[%s3] sm:$0xff] %v336
    // Predicated region
    $region18: #{mlp_forward.1} parent=1 // pred_check
      _
    $region19: #{mlp_forward.1} parent=1 // pred_check_branch
      %341 = sbr.rel (0) target = $region21
    $region20: #{mlp_forward.1} parent=1 // pred_region
      _
    $region21: #{mlp_forward.1} parent=1 // pred_fallthru
      _
    // Predicated region
    $region22: #{mlp_forward.1} parent=1 // pred_check
      _
    $region23: #{mlp_forward.1} parent=1 // pred_check_branch
      %343 = sbr.rel (0) target = $region25
    $region24: #{mlp_forward.1} parent=1 // pred_region
      _
    $region25: #{mlp_forward.1} parent=1 // pred_fallthru
      _
    %344 = vsyncpa [#allocation3], 1

</llo_original>
